<compile_context>
chip_gen: v6e
topology: v6e:2x2x1
jax: 0.10.0
libtpu: 0.0.40
codegen_flags: <defaults>
</compile_context>

<pallas_src>
import jax
import jax.numpy as jnp
from jax.experimental import pallas as pl
from jax.experimental.pallas import tpu as pltpu

# Problem size (PyTorch input is NCHW (2, 4, 16, 16)).
N, C, H, W = 2, 4, 16, 16
KH = KW = 3
PAD = 1
BN_EPS = 1e-5
HW = H * W            # 256 -> lane axis (2 full f32 lane-tiles)
NC = N * C            # 8   -> sublane axis (exactly one f32 sublane-tile)
NTAP = KH * KW        # 9

# Static lane shifts per tap: shifted[p] = x[(p + off) % HW], off = oy*W + ox.
# pltpu.roll follows jnp.roll semantics (positive shift -> toward higher index),
# so shift = (-off) % HW.  Out-of-image / wrapped lanes are zeroed by the masks.
_TAP_SHIFTS = tuple(
    (-((ky - PAD) * W + (kx - PAD))) % HW for ky in range(KH) for kx in range(KW)
)


def residual_block_kernel(x_ref, w1_ref, g1_ref, b1_ref, w2_ref, g2_ref, b2_ref,
                          masks_ref, comb_ref, o_ref):
    x = x_ref[...]            # (NC, HW) f32, lane-dense, sublane-full
    masks = masks_ref[...]    # (NTAP*NC, HW) per-tap boundary masks (shared by both convs)
    comb = comb_ref[...]      # (NC, NC)  batch-row combine, 1/(N*HW) folded in
    w1 = w1_ref[...]          # (NC, NTAP*NC)  consolidated conv1 weight
    w2 = w2_ref[...]          # (NC, NTAP*NC)  consolidated conv2 weight

    def conv3x3(a, w_big):
        # Stack the 9 shifted taps along the contraction axis (sublane-aligned
        # concat of (8,256) pieces), zero out-of-image lanes, one MXU matmul.
        taps = [a if s == 0 else pltpu.roll(a, s, axis=1) for s in _TAP_SHIFTS]
        stacked = jnp.concatenate(taps, axis=0) * masks          # (NTAP*NC, HW)
        return jnp.dot(w_big, stacked, preferred_element_type=jnp.float32)

    def batchnorm_fma(y, gamma, beta):
        # Training-mode BatchNorm2d folded into one FMA.  Per-row lane sums,
        # then per-channel combine over the batch rows (and broadcast back)
        # via a tiny matmul against comb = kron(ones(N,N), I_C)/(N*HW).
        s = jnp.sum(y, axis=1, keepdims=True)                    # (NC, 1)
        s2 = jnp.sum(y * y, axis=1, keepdims=True)               # (NC, 1)
        mean = jnp.dot(comb, s, preferred_element_type=jnp.float32)
        mean_sq = jnp.dot(comb, s2, preferred_element_type=jnp.float32)
        var = mean_sq - mean * mean
        scale = gamma * jax.lax.rsqrt(var + BN_EPS)
        bias = beta - mean * scale
        return y * scale + bias

    out = conv3x3(x, w1)                                         # conv1 (bias dropped)
    out = jnp.maximum(batchnorm_fma(out, g1_ref[...], b1_ref[...]), 0.0)  # bn1 + relu
    out = conv3x3(out, w2)                                       # conv2 (bias dropped)
    out = batchnorm_fma(out, g2_ref[...], b2_ref[...])           # bn2
    # residual add (proj is None since in_dim == out_dim) + relu; full-vreg store.
    o_ref[...] = jnp.maximum(x + out, 0.0)


def _pack_weights(w_hwio):
    """(KH,KW,Cin,Cout) HWIO conv weight -> consolidated (NC, NTAP*NC) matrix.

    Column block t is kron(I_N, w_t) with w_t[c_out, c_in] = w_hwio[ky,kx,c_in,c_out],
    matching the kernel's stacked-tap contraction order k = t*NC + n*C + c_in.
    """
    w_taps = jnp.transpose(w_hwio, (0, 1, 3, 2)).reshape(NTAP, C, C)   # (9, Cout, Cin)
    eye_n = jnp.eye(N, dtype=jnp.float32)
    blocks = jnp.einsum("ab,tij->taibj", eye_n, w_taps).reshape(NTAP, NC, NC)
    return jnp.transpose(blocks, (1, 0, 2)).reshape(NC, NTAP * NC)


def _stacked_masks():
    """(NTAP*NC, HW) per-lane validity masks, pre-broadcast to the stacked-tap shape.

    Lane p = h*W + w.  Tap (ky,kx) reads x[h+ky-1, w+kx-1]; the mask zeroes lanes
    whose source falls outside the image, which also kills the cyclic-roll wrap.
    """
    p = jnp.arange(HW)
    h, w = p // W, p % W
    rows = []
    for t in range(NTAP):
        oy, ox = t // KW - PAD, t % KW - PAD
        valid = (h + oy >= 0) & (h + oy < H) & (w + ox >= 0) & (w + ox < W)
        rows.append(valid.astype(jnp.float32))
    m = jnp.stack(rows, axis=0)                                   # (NTAP, HW)
    return jnp.broadcast_to(m[:, None, :], (NTAP, NC, HW)).reshape(NTAP * NC, HW)


@jax.jit
def residual_block(x_nchw, params):
    """x_nchw: (N, C, H, W) f32.  params: HWIO conv weights + biases + BN gamma/beta."""
    (w1, _b1, g1, be1, w2, _b2, g2, be2) = params

    x_flat = x_nchw.reshape(NC, HW)          # free reshape: NCHW -> (N*C, H*W)
    w1_big = _pack_weights(w1)
    w2_big = _pack_weights(w2)
    masks = _stacked_masks()
    comb = jnp.kron(jnp.ones((N, N), jnp.float32),
                    jnp.eye(C, dtype=jnp.float32)) / float(N * HW)

    def tile_cn(v):                          # (C,) -> (NC, 1): row n*C + c gets v[c]
        return jnp.tile(v, N).reshape(NC, 1)

    vmem = pl.BlockSpec(memory_space=pltpu.MemorySpace.VMEM)
    # Grid-less: the whole working set is ~150 KiB of VMEM and batch-stat BN couples
    # every element of the batch, so a single TensorCore invocation is the right shape.
    # TODO(synk): at real ResNet sizes, tile rows with a "parallel" grid (megacore /
    # both v7x TensorCores), keep the out-spec lane dim a large multiple of 128, put
    # the reduction axis last ("arbitrary"), and add a cross-tile BN stat combine.
    out_flat = pl.pallas_call(
        residual_block_kernel,
        out_shape=jax.ShapeDtypeStruct((NC, HW), jnp.float32),
        in_specs=[vmem] * 9,
        out_specs=vmem,
    )(x_flat, w1_big, tile_cn(g1), tile_cn(be1),
      w2_big, tile_cn(g2), tile_cn(be2), masks, comb)

    return out_flat.reshape(N, C, H, W)      # free reshape back to NCHW


def reference(x_nchw, params):
    """Pure-JAX reference with the same math as the PyTorch forward
    (training-mode BatchNorm2d, conv biases included)."""
    (w1, b1, g1, be1, w2, b2, g2, be2) = params

    def conv(x, w, b):
        y = jax.lax.conv_general_dilated(
            x, w, window_strides=(1, 1), padding=((PAD, PAD), (PAD, PAD)),
            dimension_numbers=("NCHW", "HWIO", "NCHW"))
        return y + b.reshape(1, -1, 1, 1)

    def bn(x, g, be):
        mean = jnp.mean(x, axis=(0, 2, 3), keepdims=True)
        var = jnp.mean((x - mean) ** 2, axis=(0, 2, 3), keepdims=True)
        return (x - mean) * jax.lax.rsqrt(var + BN_EPS) * g.reshape(1, -1, 1, 1) \
            + be.reshape(1, -1, 1, 1)

    out = jax.nn.relu(bn(conv(x_nchw, w1, b1), g1, be1))
    out = bn(conv(out, w2, b2), g2, be2)
    return jax.nn.relu(x_nchw + out)


def make_params(key):
    ks = jax.random.split(key, 8)
    # Conv weights kept in HWIO (= PyTorch's (Cout, Cin, kH, kW) transposed).
    w1 = jax.random.normal(ks[0], (KH, KW, C, C), jnp.float32) * 0.1
    b1 = jax.random.normal(ks[1], (C,), jnp.float32) * 0.05
    g1 = 1.0 + jax.random.normal(ks[2], (C,), jnp.float32) * 0.1
    be1 = jax.random.normal(ks[3], (C,), jnp.float32) * 0.05
    w2 = jax.random.normal(ks[4], (KH, KW, C, C), jnp.float32) * 0.1
    b2 = jax.random.normal(ks[5], (C,), jnp.float32) * 0.05
    g2 = 1.0 + jax.random.normal(ks[6], (C,), jnp.float32) * 0.1
    be2 = jax.random.normal(ks[7], (C,), jnp.float32) * 0.05
    return (w1, b1, g1, be1, w2, b2, g2, be2)


if __name__ == "__main__":
    key = jax.random.PRNGKey(0)
    kx, kp = jax.random.split(key)
    # PyTorch input layout: NCHW (2, 4, 16, 16).
    x_nchw = jax.random.normal(kx, (N, C, H, W), jnp.float32)
    params = make_params(kp)

    out = jax.block_until_ready(residual_block(x_nchw, params))
    ref = jax.block_until_ready(reference(x_nchw, params))

    assert out.shape == (N, C, H, W)
    assert jnp.max(jnp.abs(out - ref)) < 1e-4, "mismatch vs JAX reference"

    print("KERNEL_OK")
</pallas_src>

<mosaic_0001>
module attributes {stable_mosaic.version = 11 : i64} {
  func.func @residual_block_kernel(%arg0: memref<8x256xf32, #tpu.memory_space<vmem>>, %arg1: memref<8x72xf32, #tpu.memory_space<vmem>>, %arg2: memref<8x1xf32, #tpu.memory_space<vmem>>, %arg3: memref<8x1xf32, #tpu.memory_space<vmem>>, %arg4: memref<8x72xf32, #tpu.memory_space<vmem>>, %arg5: memref<8x1xf32, #tpu.memory_space<vmem>>, %arg6: memref<8x1xf32, #tpu.memory_space<vmem>>, %arg7: memref<72x256xf32, #tpu.memory_space<vmem>>, %arg8: memref<8x8xf32, #tpu.memory_space<vmem>>, %arg9: memref<8x256xf32, #tpu.memory_space<vmem>>) attributes {dimension_semantics = [], scalar_prefetch = 0 : i64, scratch_operands = 0 : i64, tpu.core_type = #tpu.core_type<tc>} {
    %c0 = arith.constant 0 : index
    %c0_0 = arith.constant 0 : index
    %0 = vector.load %arg0[%c0, %c0_0] : memref<8x256xf32, #tpu.memory_space<vmem>>, vector<8x256xf32>
    %c0_1 = arith.constant 0 : index
    %c0_2 = arith.constant 0 : index
    %1 = vector.load %arg7[%c0_1, %c0_2] : memref<72x256xf32, #tpu.memory_space<vmem>>, vector<72x256xf32>
    %c0_3 = arith.constant 0 : index
    %c0_4 = arith.constant 0 : index
    %2 = vector.load %arg8[%c0_3, %c0_4] : memref<8x8xf32, #tpu.memory_space<vmem>>, vector<8x8xf32>
    %c0_5 = arith.constant 0 : index
    %c0_6 = arith.constant 0 : index
    %3 = vector.load %arg1[%c0_5, %c0_6] : memref<8x72xf32, #tpu.memory_space<vmem>>, vector<8x72xf32>
    %c0_7 = arith.constant 0 : index
    %c0_8 = arith.constant 0 : index
    %4 = vector.load %arg4[%c0_7, %c0_8] : memref<8x72xf32, #tpu.memory_space<vmem>>, vector<8x72xf32>
    %c17_i32 = arith.constant 17 : i32
    %5 = tpu.dynamic_rotate %0 by %c17_i32 dim 1 : vector<8x256xf32>, i32 -> vector<8x256xf32>
    %c16_i32 = arith.constant 16 : i32
    %6 = tpu.dynamic_rotate %0 by %c16_i32 dim 1 : vector<8x256xf32>, i32 -> vector<8x256xf32>
    %c15_i32 = arith.constant 15 : i32
    %7 = tpu.dynamic_rotate %0 by %c15_i32 dim 1 : vector<8x256xf32>, i32 -> vector<8x256xf32>
    %c1_i32 = arith.constant 1 : i32
    %8 = tpu.dynamic_rotate %0 by %c1_i32 dim 1 : vector<8x256xf32>, i32 -> vector<8x256xf32>
    %c255_i32 = arith.constant 255 : i32
    %9 = tpu.dynamic_rotate %0 by %c255_i32 dim 1 : vector<8x256xf32>, i32 -> vector<8x256xf32>
    %c241_i32 = arith.constant 241 : i32
    %10 = tpu.dynamic_rotate %0 by %c241_i32 dim 1 : vector<8x256xf32>, i32 -> vector<8x256xf32>
    %c240_i32 = arith.constant 240 : i32
    %11 = tpu.dynamic_rotate %0 by %c240_i32 dim 1 : vector<8x256xf32>, i32 -> vector<8x256xf32>
    %c239_i32 = arith.constant 239 : i32
    %12 = tpu.dynamic_rotate %0 by %c239_i32 dim 1 : vector<8x256xf32>, i32 -> vector<8x256xf32>
    %13 = tpu.concatenate %5, %6, %7, %8, %0, %9, %10, %11, %12 in 0 : vector<8x256xf32>, vector<8x256xf32>, vector<8x256xf32>, vector<8x256xf32>, vector<8x256xf32>, vector<8x256xf32>, vector<8x256xf32>, vector<8x256xf32>, vector<8x256xf32> -> vector<72x256xf32>
    %14 = arith.mulf %13, %1 : vector<72x256xf32>
    %cst = arith.constant dense<0.000000e+00> : vector<8x256xf32>
    %15 = tpu.matmul %3, %14, %cst {dimension_numbers = #tpu.dot_dimension_numbers<[1], [0], [0], [1], [0, 0, 1, 1], [], []>} : vector<8x72xf32>, vector<72x256xf32>, vector<8x256xf32> -> vector<8x256xf32>
    %c0_9 = arith.constant 0 : index
    %c0_10 = arith.constant 0 : index
    %16 = vector.load %arg2[%c0_9, %c0_10] : memref<8x1xf32, #tpu.memory_space<vmem>>, vector<8x1xf32>
    %c0_11 = arith.constant 0 : index
    %c0_12 = arith.constant 0 : index
    %17 = vector.load %arg3[%c0_11, %c0_12] : memref<8x1xf32, #tpu.memory_space<vmem>>, vector<8x1xf32>
    %cst_13 = arith.constant dense<0.000000e+00> : vector<8xf32>
    %18 = vector.multi_reduction <add>, %15, %cst_13 [1] : vector<8x256xf32> to vector<8xf32>
    %19 = vector.shape_cast %18 : vector<8xf32> to vector<8x1xf32>
    %20 = arith.mulf %15, %15 : vector<8x256xf32>
    %cst_14 = arith.constant dense<0.000000e+00> : vector<8xf32>
    %21 = vector.multi_reduction <add>, %20, %cst_14 [1] : vector<8x256xf32> to vector<8xf32>
    %22 = vector.shape_cast %21 : vector<8xf32> to vector<8x1xf32>
    %cst_15 = arith.constant dense<0.000000e+00> : vector<8x1xf32>
    %23 = tpu.matmul %2, %19, %cst_15 {dimension_numbers = #tpu.dot_dimension_numbers<[1], [0], [0], [1], [0, 0, 1, 1], [], []>} : vector<8x8xf32>, vector<8x1xf32>, vector<8x1xf32> -> vector<8x1xf32>
    %cst_16 = arith.constant dense<0.000000e+00> : vector<8x1xf32>
    %24 = tpu.matmul %2, %22, %cst_16 {dimension_numbers = #tpu.dot_dimension_numbers<[1], [0], [0], [1], [0, 0, 1, 1], [], []>} : vector<8x8xf32>, vector<8x1xf32>, vector<8x1xf32> -> vector<8x1xf32>
    %25 = arith.mulf %23, %23 : vector<8x1xf32>
    %26 = arith.subf %24, %25 : vector<8x1xf32>
    %cst_17 = arith.constant 9.99999974E-6 : f32
    %27 = vector.broadcast %cst_17 : f32 to vector<8x1xf32>
    %28 = arith.addf %26, %27 : vector<8x1xf32>
    %29 = math.rsqrt %28 : vector<8x1xf32>
    %30 = arith.mulf %16, %29 : vector<8x1xf32>
    %31 = arith.mulf %23, %30 : vector<8x1xf32>
    %32 = arith.subf %17, %31 : vector<8x1xf32>
    %33 = vector.broadcast %30 : vector<8x1xf32> to vector<8x256xf32>
    %34 = arith.mulf %15, %33 : vector<8x256xf32>
    %35 = vector.broadcast %32 : vector<8x1xf32> to vector<8x256xf32>
    %36 = arith.addf %34, %35 : vector<8x256xf32>
    %cst_18 = arith.constant 0.000000e+00 : f32
    %37 = vector.broadcast %cst_18 : f32 to vector<8x256xf32>
    %38 = arith.maximumf %36, %37 : vector<8x256xf32>
    %c17_i32_19 = arith.constant 17 : i32
    %39 = tpu.dynamic_rotate %38 by %c17_i32_19 dim 1 : vector<8x256xf32>, i32 -> vector<8x256xf32>
    %c16_i32_20 = arith.constant 16 : i32
    %40 = tpu.dynamic_rotate %38 by %c16_i32_20 dim 1 : vector<8x256xf32>, i32 -> vector<8x256xf32>
    %c15_i32_21 = arith.constant 15 : i32
    %41 = tpu.dynamic_rotate %38 by %c15_i32_21 dim 1 : vector<8x256xf32>, i32 -> vector<8x256xf32>
    %c1_i32_22 = arith.constant 1 : i32
    %42 = tpu.dynamic_rotate %38 by %c1_i32_22 dim 1 : vector<8x256xf32>, i32 -> vector<8x256xf32>
    %c255_i32_23 = arith.constant 255 : i32
    %43 = tpu.dynamic_rotate %38 by %c255_i32_23 dim 1 : vector<8x256xf32>, i32 -> vector<8x256xf32>
    %c241_i32_24 = arith.constant 241 : i32
    %44 = tpu.dynamic_rotate %38 by %c241_i32_24 dim 1 : vector<8x256xf32>, i32 -> vector<8x256xf32>
    %c240_i32_25 = arith.constant 240 : i32
    %45 = tpu.dynamic_rotate %38 by %c240_i32_25 dim 1 : vector<8x256xf32>, i32 -> vector<8x256xf32>
    %c239_i32_26 = arith.constant 239 : i32
    %46 = tpu.dynamic_rotate %38 by %c239_i32_26 dim 1 : vector<8x256xf32>, i32 -> vector<8x256xf32>
    %47 = tpu.concatenate %39, %40, %41, %42, %38, %43, %44, %45, %46 in 0 : vector<8x256xf32>, vector<8x256xf32>, vector<8x256xf32>, vector<8x256xf32>, vector<8x256xf32>, vector<8x256xf32>, vector<8x256xf32>, vector<8x256xf32>, vector<8x256xf32> -> vector<72x256xf32>
    %48 = arith.mulf %47, %1 : vector<72x256xf32>
    %cst_27 = arith.constant dense<0.000000e+00> : vector<8x256xf32>
    %49 = tpu.matmul %4, %48, %cst_27 {dimension_numbers = #tpu.dot_dimension_numbers<[1], [0], [0], [1], [0, 0, 1, 1], [], []>} : vector<8x72xf32>, vector<72x256xf32>, vector<8x256xf32> -> vector<8x256xf32>
    %c0_28 = arith.constant 0 : index
    %c0_29 = arith.constant 0 : index
    %50 = vector.load %arg5[%c0_28, %c0_29] : memref<8x1xf32, #tpu.memory_space<vmem>>, vector<8x1xf32>
    %c0_30 = arith.constant 0 : index
    %c0_31 = arith.constant 0 : index
    %51 = vector.load %arg6[%c0_30, %c0_31] : memref<8x1xf32, #tpu.memory_space<vmem>>, vector<8x1xf32>
    %cst_32 = arith.constant dense<0.000000e+00> : vector<8xf32>
    %52 = vector.multi_reduction <add>, %49, %cst_32 [1] : vector<8x256xf32> to vector<8xf32>
    %53 = vector.shape_cast %52 : vector<8xf32> to vector<8x1xf32>
    %54 = arith.mulf %49, %49 : vector<8x256xf32>
    %cst_33 = arith.constant dense<0.000000e+00> : vector<8xf32>
    %55 = vector.multi_reduction <add>, %54, %cst_33 [1] : vector<8x256xf32> to vector<8xf32>
    %56 = vector.shape_cast %55 : vector<8xf32> to vector<8x1xf32>
    %cst_34 = arith.constant dense<0.000000e+00> : vector<8x1xf32>
    %57 = tpu.matmul %2, %53, %cst_34 {dimension_numbers = #tpu.dot_dimension_numbers<[1], [0], [0], [1], [0, 0, 1, 1], [], []>} : vector<8x8xf32>, vector<8x1xf32>, vector<8x1xf32> -> vector<8x1xf32>
    %cst_35 = arith.constant dense<0.000000e+00> : vector<8x1xf32>
    %58 = tpu.matmul %2, %56, %cst_35 {dimension_numbers = #tpu.dot_dimension_numbers<[1], [0], [0], [1], [0, 0, 1, 1], [], []>} : vector<8x8xf32>, vector<8x1xf32>, vector<8x1xf32> -> vector<8x1xf32>
    %59 = arith.mulf %57, %57 : vector<8x1xf32>
    %60 = arith.subf %58, %59 : vector<8x1xf32>
    %cst_36 = arith.constant 9.99999974E-6 : f32
    %61 = vector.broadcast %cst_36 : f32 to vector<8x1xf32>
    %62 = arith.addf %60, %61 : vector<8x1xf32>
    %63 = math.rsqrt %62 : vector<8x1xf32>
    %64 = arith.mulf %50, %63 : vector<8x1xf32>
    %65 = arith.mulf %57, %64 : vector<8x1xf32>
    %66 = arith.subf %51, %65 : vector<8x1xf32>
    %67 = vector.broadcast %64 : vector<8x1xf32> to vector<8x256xf32>
    %68 = arith.mulf %49, %67 : vector<8x256xf32>
    %69 = vector.broadcast %66 : vector<8x1xf32> to vector<8x256xf32>
    %70 = arith.addf %68, %69 : vector<8x256xf32>
    %71 = arith.addf %0, %70 : vector<8x256xf32>
    %cst_37 = arith.constant 0.000000e+00 : f32
    %72 = vector.broadcast %cst_37 : f32 to vector<8x256xf32>
    %73 = arith.maximumf %71, %72 : vector<8x256xf32>
    %c0_38 = arith.constant 0 : index
    %c0_39 = arith.constant 0 : index
    %74 = vector.load %arg9[%c0_38, %c0_39] : memref<8x256xf32, #tpu.memory_space<vmem>>, vector<8x256xf32>
    tpu.vector_store %arg9[%c0_38, %c0_39], %73 {strides = array<i32>} : memref<8x256xf32, #tpu.memory_space<vmem>>, vector<8x256xf32>,
    return
  }
}

</mosaic_0001>

<llo_original>
// kernel: tile.23
$region0: #{tile.23}
  #allocation0 [shape = 's32[1]{0}', space=sflag, size = 0x4, scoped, tag = 'scoped memory for tile.23']
  %s0 = inlined_call_operand.vmem [shape: f32[4], index: 0, kind: input, shape index: {}]
  %s1 = inlined_call_operand.vmem [shape: f32[2,4], index: 1, kind: output, shape index: {}]
  // Predicated region
  $region2: #{tile.23} parent=0 // pred_check
    _
  $region3: #{tile.23} parent=0 // pred_check_branch
    %3 = sbr.rel (0) target = $region5
  $region4: #{tile.23} parent=0 // pred_region
    _
  $region5: #{tile.23} parent=0 // pred_fallthru
    _
  %v4 = vld [vmem:[%s0] ss:$0 sm:$0xff]
  %5 = vst [vmem:[%s1] sm:$0x3] %v4

// kernel: tile.0
$region0: #{tile.0}
  %s0 = inlined_call_operand.vmem [shape: f32[2,4], index: 0, kind: input, shape index: {}]
  %s1 = inlined_call_operand.vmem [shape: f32[8,1], index: 1, kind: output, shape index: {}]
  $region1: #{tile.0} parent=0
    #allocation0 [shape = 'u8[4096]{0}', space=vmem, size = 0x1000, scoped, tag = 'scoped mem for input reshape']
    %s3 = sshll.u32 1, 2
    %s4 = ssub.s32 %s3, 1
    %v5 = vld [vmem:[%s0] sm:%s4]
    %6 = vst [vmem:[#allocation0] sm:%s4] %v5
    %v7 = vld [vmem:[#allocation0] sm:$0x3]
    %vm8 = vcmask 7168
    %9 = vst.msk [vmem:[%s1] ss:$4 sm:$0x3] %vm8, %v7
    %v10 = vld [vmem:[#allocation0] sm:$0x3]
    %11 = vrot.lane.b32.xlu0 %v10, 127
    %v12 = vpop.permute.xlu0 %11
    %vm13 = vcmask 7168
    %s14 = scalar_lea.vmem %s1, 1
    %15 = vst.msk [vmem:[%s14] ss:$4 sm:$0x3] %vm13, %v12
    %v16 = vld [vmem:[#allocation0] sm:$0x3]
    %17 = vrot.lane.b32.xlu0 %v16, 126
    %v18 = vpop.permute.xlu0 %17
    %vm19 = vcmask 7168
    %s20 = scalar_lea.vmem %s1, 2
    %21 = vst.msk [vmem:[%s20] ss:$4 sm:$0x3] %vm19, %v18
    %v22 = vld [vmem:[#allocation0] sm:$0x3]
    %23 = vrot.lane.b32.xlu0 %v22, 125
    %v24 = vpop.permute.xlu0 %23
    %vm25 = vcmask 7168
    %s26 = scalar_lea.vmem %s1, 3
    %27 = vst.msk [vmem:[%s26] ss:$4 sm:$0x3] %vm25, %v24

// kernel: residual_block.1
$region0: #{residual_block.1}
  #allocation0 [shape = 'u32[]', space=smem, size = 0x4, offset = 0x4, fixed_abs, tag = 'smem constant byte address 0x4 - core index']
  #allocation1 [shape = 'u32[144,128]{1,0:T(1,128)}', space=vmem, size = 0x12000, scoped, tag = 'internal scratch']
  %s0 = inlined_call_operand.vmem [shape: f32[8,256], index: 0, kind: input, shape index: {}]
  %s1 = inlined_call_operand.vmem [shape: f32[8,72], index: 1, kind: input, shape index: {}]
  %s2 = inlined_call_operand.vmem [shape: f32[8,1], index: 2, kind: input, shape index: {}]
  %s3 = inlined_call_operand.vmem [shape: f32[8,1], index: 3, kind: input, shape index: {}]
  %s4 = inlined_call_operand.vmem [shape: f32[8,72], index: 4, kind: input, shape index: {}]
  %s5 = inlined_call_operand.vmem [shape: f32[8,1], index: 5, kind: input, shape index: {}]
  %s6 = inlined_call_operand.vmem [shape: f32[8,1], index: 6, kind: input, shape index: {}]
  %s7 = inlined_call_operand.vmem [shape: f32[72,256], index: 7, kind: input, shape index: {}]
  %s8 = inlined_call_operand.vmem [shape: f32[8,8], index: 8, kind: input, shape index: {}]
  %s9 = inlined_call_operand.vmem [shape: f32[8,256], index: 9, kind: output, shape index: {}]
  %s10 = sld [smem:[#allocation0]]
  $region46: #{residual_block.1} parent=0
    _
  %s12 = ssub.s32 1, %s10
  %s13 = scalar_select 0, %s12, %s10
  // Predicated region
  $region2: #{residual_block.1} parent=0 // pred_check
    _
  $region3: #{residual_block.1} parent=0 // pred_check_branch
    %15 = sbr.rel (0) target = $region5
  $region4: #{residual_block.1} parent=0 // pred_region
    _
  $region5: #{residual_block.1} parent=0 // pred_fallthru
    _
  // Predicated region
  $region6: #{residual_block.1} parent=0 // pred_check
    _
  $region7: #{residual_block.1} parent=0 // pred_check_branch
    %17 = sbr.rel (0) target = $region9
  $region8: #{residual_block.1} parent=0 // pred_region
    _
  $region9: #{residual_block.1} parent=0 // pred_fallthru
    _
  // Predicated region
  $region10: #{residual_block.1} parent=0 // pred_check
    _
  $region11: #{residual_block.1} parent=0 // pred_check_branch
    %19 = sbr.rel (0) target = $region13
  $region12: #{residual_block.1} parent=0 // pred_region
    _
  $region13: #{residual_block.1} parent=0 // pred_fallthru
    _
  // Predicated region
  $region14: #{residual_block.1} parent=0 // pred_check
    _
  $region15: #{residual_block.1} parent=0 // pred_check_branch
    %21 = sbr.rel (0) target = $region17
  $region16: #{residual_block.1} parent=0 // pred_region
    _
  $region17: #{residual_block.1} parent=0 // pred_fallthru
    _
  // Predicated region
  $region18: #{residual_block.1} parent=0 // pred_check
    _
  $region19: #{residual_block.1} parent=0 // pred_check_branch
    %23 = sbr.rel (0) target = $region21
  $region20: #{residual_block.1} parent=0 // pred_region
    _
  $region21: #{residual_block.1} parent=0 // pred_fallthru
    _
  // Predicated region
  $region22: #{residual_block.1} parent=0 // pred_check
    _
  $region23: #{residual_block.1} parent=0 // pred_check_branch
    %25 = sbr.rel (0) target = $region25
  $region24: #{residual_block.1} parent=0 // pred_region
    _
  $region25: #{residual_block.1} parent=0 // pred_fallthru
    _
  // Predicated region
  $region26: #{residual_block.1} parent=0 // pred_check
    _
  $region27: #{residual_block.1} parent=0 // pred_check_branch
    %27 = sbr.rel (0) target = $region29
  $region28: #{residual_block.1} parent=0 // pred_region
    _
  $region29: #{residual_block.1} parent=0 // pred_fallthru
    _
  // Predicated region
  $region30: #{residual_block.1} parent=0 // pred_check
    _
  $region31: #{residual_block.1} parent=0 // pred_check_branch
    %29 = sbr.rel (0) target = $region33
  $region32: #{residual_block.1} parent=0 // pred_region
    _
  $region33: #{residual_block.1} parent=0 // pred_fallthru
    _
  // Predicated region
  $region34: #{residual_block.1} parent=0 // pred_check
    _
  $region35: #{residual_block.1} parent=0 // pred_check_branch
    %31 = sbr.rel (0) target = $region37
  $region36: #{residual_block.1} parent=0 // pred_region
    _
  $region37: #{residual_block.1} parent=0 // pred_fallthru
    _
  %v32 = vld [vmem:[%s0] sm:$0xff]
  %v33 = vld [vmem:[%s0 + $0x8] sm:$0xff]
  %v34 = vld [vmem:[%s7] sm:$0xff]
  %v35 = vld [vmem:[%s7 + $0x8] sm:$0xff]
  %v36 = vld [vmem:[%s7 + $0x10] sm:$0xff]
  %v37 = vld [vmem:[%s7 + $0x18] sm:$0xff]
  %v38 = vld [vmem:[%s7 + $0x20] sm:$0xff]
  %v39 = vld [vmem:[%s7 + $0x28] sm:$0xff]
  %v40 = vld [vmem:[%s7 + $0x30] sm:$0xff]
  %v41 = vld [vmem:[%s7 + $0x38] sm:$0xff]
  %v42 = vld [vmem:[%s7 + $0x40] sm:$0xff]
  %v43 = vld [vmem:[%s7 + $0x48] sm:$0xff]
  %v44 = vld [vmem:[%s7 + $0x50] sm:$0xff]
  %v45 = vld [vmem:[%s7 + $0x58] sm:$0xff]
  %v46 = vld [vmem:[%s7 + $0x60] sm:$0xff]
  %v47 = vld [vmem:[%s7 + $0x68] sm:$0xff]
  %v48 = vld [vmem:[%s7 + $0x70] sm:$0xff]
  %v49 = vld [vmem:[%s7 + $0x78] sm:$0xff]
  %v50 = vld [vmem:[%s7 + $0x80] sm:$0xff]
  %v51 = vld [vmem:[%s7 + $0x88] sm:$0xff]
  %v52 = vld [vmem:[%s8] sm:$0xff]
  %v53 = vld [vmem:[%s1] sm:$0xff]
  %v54 = vld [vmem:[%s4] sm:$0xff]
  %55 = vrot.lane.b32.xlu0 %v32, 17
  %v56 = vpop.permute.xlu0 %55
  %57 = vrot.lane.b32.xlu0 %v33, 17
  %v58 = vpop.permute.xlu0 %57
  %v59 = vlaneseq
  %v60 = vand.u32 %v59, 127
  %vm61 = vcmp.lt.s32.totalorder %v60, 17
  %v62 = vsel %vm61, %v56, %v58
  %v63 = vsel %vm61, %v58, %v56
  %64 = vrot.lane.b32.xlu0 %v32, 16
  %v65 = vpop.permute.xlu0 %64
  %66 = vrot.lane.b32.xlu0 %v33, 16
  %v67 = vpop.permute.xlu0 %66
  %vm68 = vcmp.lt.s32.totalorder %v60, 16
  %v69 = vsel %vm68, %v65, %v67
  %v70 = vsel %vm68, %v67, %v65
  %71 = vrot.lane.b32.xlu0 %v32, 15
  %v72 = vpop.permute.xlu0 %71
  %73 = vrot.lane.b32.xlu0 %v33, 15
  %v74 = vpop.permute.xlu0 %73
  %vm75 = vcmp.lt.s32.totalorder %v60, 15
  %v76 = vsel %vm75, %v72, %v74
  %v77 = vsel %vm75, %v74, %v72
  %78 = vrot.lane.b32.xlu0 %v32, 1
  %v79 = vpop.permute.xlu0 %78
  %80 = vrot.lane.b32.xlu0 %v33, 1
  %v81 = vpop.permute.xlu0 %80
  %vm82 = vcmp.lt.s32.totalorder %v60, 1
  %v83 = vsel %vm82, %v79, %v81
  %v84 = vsel %vm82, %v81, %v79
  %85 = vrot.lane.b32.xlu0 %v32, 127
  %v86 = vpop.permute.xlu0 %85
  %87 = vrot.lane.b32.xlu0 %v33, 127
  %v88 = vpop.permute.xlu0 %87
  %vm89 = vcmp.lt.s32.totalorder %v60, 127
  %v90 = vsel %vm89, %v86, %v88
  %v91 = vsel %vm89, %v88, %v86
  %92 = vrot.lane.b32.xlu0 %v32, 113
  %v93 = vpop.permute.xlu0 %92
  %94 = vrot.lane.b32.xlu0 %v33, 113
  %v95 = vpop.permute.xlu0 %94
  %vm96 = vcmp.lt.s32.totalorder %v60, 113
  %v97 = vsel %vm96, %v93, %v95
  %v98 = vsel %vm96, %v95, %v93
  %99 = vrot.lane.b32.xlu0 %v32, 112
  %v100 = vpop.permute.xlu0 %99
  %101 = vrot.lane.b32.xlu0 %v33, 112
  %v102 = vpop.permute.xlu0 %101
  %vm103 = vcmp.lt.s32.totalorder %v60, 112
  %v104 = vsel %vm103, %v100, %v102
  %v105 = vsel %vm103, %v102, %v100
  %106 = vrot.lane.b32.xlu0 %v32, 111
  %v107 = vpop.permute.xlu0 %106
  %108 = vrot.lane.b32.xlu0 %v33, 111
  %v109 = vpop.permute.xlu0 %108
  %vm110 = vcmp.lt.s32.totalorder %v60, 111
  %v111 = vsel %vm110, %v107, %v109
  %v112 = vsel %vm110, %v109, %v107
  %v113 = vmul.f32 %v63, %v34
  %v114 = vmul.f32 %v62, %v35
  %v115 = vmul.f32 %v70, %v36
  %v116 = vmul.f32 %v69, %v37
  %v117 = vmul.f32 %v77, %v38
  %v118 = vmul.f32 %v76, %v39
  %v119 = vmul.f32 %v84, %v40
  %v120 = vmul.f32 %v83, %v41
  %v121 = vmul.f32 %v32, %v42
  %v122 = vmul.f32 %v33, %v43
  %v123 = vmul.f32 %v90, %v44
  %v124 = vmul.f32 %v91, %v45
  %v125 = vmul.f32 %v97, %v46
  %v126 = vmul.f32 %v98, %v47
  %v127 = vmul.f32 %v104, %v48
  %v128 = vmul.f32 %v105, %v49
  %v129 = vmul.f32 %v111, %v50
  %v130 = vmul.f32 %v112, %v51
  %vm131 = vcmask 588800
  %v133 = vsel %vm131, %v53, 0
  %135 = vmatprep.subr.mxu0 0.0
  %136 = vmatpush1.msra.mxu0 0.0
  %137 = vmatprep.subr.mxu0 0.0
  %138 = vmatpush1.msra.mxu0 0.0
  %139 = vmatprep.subr.mxu0 0.0
  %140 = vmatpush1.msra.mxu0 0.0
  %141 = vmatprep.subr.mxu0 0.0
  %142 = vmatpush1.msra.mxu0 0.0
  %143 = vmatprep.subr.mxu0 0.0
  %144 = vmatpush1.msra.mxu0 0.0
  %145 = vmatprep.subr.mxu0 0.0
  %146 = vmatpush1.msra.mxu0 0.0
  %147 = vmatprep.subr.mxu0 0.0
  %148 = vmatpush1.msra.mxu0 0.0
  %149 = vmatprep.subr.mxu0 %v130
  %150 = vmatpush1.msra.mxu0 %v129
  %151 = vmatprep.subr.mxu0 %v128
  %152 = vmatpush1.msra.mxu0 %v127
  %153 = vmatprep.subr.mxu0 %v126
  %154 = vmatpush1.msra.mxu0 %v125
  %155 = vmatprep.subr.mxu0 %v124
  %156 = vmatpush1.msra.mxu0 %v123
  %157 = vmatprep.subr.mxu0 %v122
  %158 = vmatpush1.msra.mxu0 %v121
  %159 = vmatprep.subr.mxu0 %v120
  %160 = vmatpush1.msra.mxu0 %v119
  %161 = vmatprep.subr.mxu0 %v118
  %162 = vmatpush1.msra.mxu0 %v117
  %163 = vmatprep.subr.mxu0 %v116
  %164 = vmatpush1.msra.mxu0 %v115
  %165 = vmatprep.subr.mxu0 %v114
  %166 = vmatpush1.msra.mxu0 %v113
  %167 = vmatprep.subr.mxu0 0.0
  %168 = vmatpush2.msra.mxu0 0.0
  %169 = vmatprep.subr.mxu0 0.0
  %170 = vmatpush2.msra.mxu0 0.0
  %171 = vmatprep.subr.mxu0 0.0
  %172 = vmatpush2.msra.mxu0 0.0
  %173 = vmatprep.subr.mxu0 0.0
  %174 = vmatpush2.msra.mxu0 0.0
  %175 = vmatprep.subr.mxu0 0.0
  %176 = vmatpush2.msra.mxu0 0.0
  %177 = vmatprep.subr.mxu0 0.0
  %178 = vmatpush2.msra.mxu0 0.0
  %179 = vmatprep.subr.mxu0 0.0
  %180 = vmatpush2.msra.mxu0 0.0
  %181 = vmatprep.subr.mxu0 0.0
  %182 = vmatpush2.msra.mxu0 0.0
  %183 = vmatprep.subr.mxu0 0.0
  %184 = vmatpush2.msra.mxu0 0.0
  %185 = vmatprep.subr.mxu0 0.0
  %186 = vmatpush2.msra.mxu0 0.0
  %187 = vmatprep.subr.mxu0 0.0
  %188 = vmatpush2.msra.mxu0 0.0
  %189 = vmatprep.subr.mxu0 0.0
  %190 = vmatpush2.msra.mxu0 0.0
  %191 = vmatprep.subr.mxu0 0.0
  %192 = vmatpush2.msra.mxu0 0.0
  %193 = vmatprep.subr.mxu0 0.0
  %194 = vmatpush2.msra.mxu0 0.0
  %195 = vmatprep.subr.mxu0 0.0
  %196 = vmatpush2.msra.mxu0 0.0
  %197 = vmatprep.subr.mxu0 0.0
  %198 = vmatpush2.msra.mxu0 0.0
  %199 = vmatprep.mubr.f32.mxu0 0.0
  %200 = vmatmul.mubr.f32.gmra.mxu0 %v133
  %v201 = vpop.f32.mrf.mxu0
  %v202 = vadd.f32 0.0, %v201
  %v203 = vpop.f32.mrf.mxu0
  %v204 = vadd.f32 0.0, %v203
  %205 = vdwg.mxu0
  %v206 = vld [vmem:[%s2] sm:$0xff]
  %v207 = vld [vmem:[%s3] sm:$0xff]
  %v208 = vadd.f32 %v202, %v204
  %209 = vadd.xlane.f32.xlu0 %v208
  %v210 = vpop.xlane.xlu0 %209
  %v211 = vmul.f32 %v202, %v202
  %v212 = vmul.f32 %v204, %v204
  %v213 = vadd.f32 %v211, %v212
  %214 = vadd.xlane.f32.xlu0 %v213
  %v215 = vpop.xlane.xlu0 %214
  %vm216 = vcmask 64512
  %v218 = vsel %vm216, %v52, 0
  %220 = vmatprep.subr.mxu0 0.0
  %221 = vmatpush1.msra.mxu0 0.0
  %222 = vmatprep.subr.mxu0 0.0
  %223 = vmatpush1.msra.mxu0 0.0
  %224 = vmatprep.subr.mxu0 0.0
  %225 = vmatpush1.msra.mxu0 0.0
  %226 = vmatprep.subr.mxu0 0.0
  %227 = vmatpush1.msra.mxu0 0.0
  %228 = vmatprep.subr.mxu0 0.0
  %229 = vmatpush1.msra.mxu0 0.0
  %230 = vmatprep.subr.mxu0 0.0
  %231 = vmatpush1.msra.mxu0 0.0
  %232 = vmatprep.subr.mxu0 0.0
  %233 = vmatpush1.msra.mxu0 0.0
  %234 = vmatprep.subr.mxu0 0.0
  %235 = vmatpush1.msra.mxu0 0.0
  %236 = vmatprep.subr.mxu0 0.0
  %237 = vmatpush1.msra.mxu0 0.0
  %238 = vmatprep.subr.mxu0 0.0
  %239 = vmatpush1.msra.mxu0 0.0
  %240 = vmatprep.subr.mxu0 0.0
  %241 = vmatpush1.msra.mxu0 0.0
  %242 = vmatprep.subr.mxu0 0.0
  %243 = vmatpush1.msra.mxu0 0.0
  %244 = vmatprep.subr.mxu0 0.0
  %245 = vmatpush1.msra.mxu0 0.0
  %246 = vmatprep.subr.mxu0 0.0
  %247 = vmatpush1.msra.mxu0 0.0
  %248 = vmatprep.subr.mxu0 0.0
  %249 = vmatpush1.msra.mxu0 0.0
  %250 = vmatprep.subr.mxu0 0.0
  %251 = vmatpush1.msra.mxu0 %v210
  %252 = vmatprep.subr.mxu0 0.0
  %253 = vmatpush2.msra.mxu0 0.0
  %254 = vmatprep.subr.mxu0 0.0
  %255 = vmatpush2.msra.mxu0 0.0
  %256 = vmatprep.subr.mxu0 0.0
  %257 = vmatpush2.msra.mxu0 0.0
  %258 = vmatprep.subr.mxu0 0.0
  %259 = vmatpush2.msra.mxu0 0.0
  %260 = vmatprep.subr.mxu0 0.0
  %261 = vmatpush2.msra.mxu0 0.0
  %262 = vmatprep.subr.mxu0 0.0
  %263 = vmatpush2.msra.mxu0 0.0
  %264 = vmatprep.subr.mxu0 0.0
  %265 = vmatpush2.msra.mxu0 0.0
  %266 = vmatprep.subr.mxu0 0.0
  %267 = vmatpush2.msra.mxu0 0.0
  %268 = vmatprep.subr.mxu0 0.0
  %269 = vmatpush2.msra.mxu0 0.0
  %270 = vmatprep.subr.mxu0 0.0
  %271 = vmatpush2.msra.mxu0 0.0
  %272 = vmatprep.subr.mxu0 0.0
  %273 = vmatpush2.msra.mxu0 0.0
  %274 = vmatprep.subr.mxu0 0.0
  %275 = vmatpush2.msra.mxu0 0.0
  %276 = vmatprep.subr.mxu0 0.0
  %277 = vmatpush2.msra.mxu0 0.0
  %278 = vmatprep.subr.mxu0 0.0
  %279 = vmatpush2.msra.mxu0 0.0
  %280 = vmatprep.subr.mxu0 0.0
  %281 = vmatpush2.msra.mxu0 0.0
  %282 = vmatprep.subr.mxu0 0.0
  %283 = vmatpush2.msra.mxu0 0.0
  %284 = vmatprep.mubr.f32.mxu0 0.0
  %285 = vmatmul.mubr.f32.gmra.mxu0 %v218
  %v286 = vpop.f32.mrf.mxu0
  %v287 = vadd.f32 0.0, %v286
  %v288 = vpop.f32.mrf.mxu0
  %289 = vdwg.mxu0
  %290 = vmatprep.subr.mxu0 0.0
  %291 = vmatpush1.msra.mxu0 0.0
  %292 = vmatprep.subr.mxu0 0.0
  %293 = vmatpush1.msra.mxu0 0.0
  %294 = vmatprep.subr.mxu0 0.0
  %295 = vmatpush1.msra.mxu0 0.0
  %296 = vmatprep.subr.mxu0 0.0
  %297 = vmatpush1.msra.mxu0 0.0
  %298 = vmatprep.subr.mxu0 0.0
  %299 = vmatpush1.msra.mxu0 0.0
  %300 = vmatprep.subr.mxu0 0.0
  %301 = vmatpush1.msra.mxu0 0.0
  %302 = vmatprep.subr.mxu0 0.0
  %303 = vmatpush1.msra.mxu0 0.0
  %304 = vmatprep.subr.mxu0 0.0
  %305 = vmatpush1.msra.mxu0 0.0
  %306 = vmatprep.subr.mxu0 0.0
  %307 = vmatpush1.msra.mxu0 0.0
  %308 = vmatprep.subr.mxu0 0.0
  %309 = vmatpush1.msra.mxu0 0.0
  %310 = vmatprep.subr.mxu0 0.0
  %311 = vmatpush1.msra.mxu0 0.0
  %312 = vmatprep.subr.mxu0 0.0
  %313 = vmatpush1.msra.mxu0 0.0
  %314 = vmatprep.subr.mxu0 0.0
  %315 = vmatpush1.msra.mxu0 0.0
  %316 = vmatprep.subr.mxu0 0.0
  %317 = vmatpush1.msra.mxu0 0.0
  %318 = vmatprep.subr.mxu0 0.0
  %319 = vmatpush1.msra.mxu0 0.0
  %320 = vmatprep.subr.mxu0 0.0
  %321 = vmatpush1.msra.mxu0 %v215
  %322 = vmatprep.subr.mxu0 0.0
  %323 = vmatpush2.msra.mxu0 0.0
  %324 = vmatprep.subr.mxu0 0.0
  %325 = vmatpush2.msra.mxu0 0.0
  %326 = vmatprep.subr.mxu0 0.0
  %327 = vmatpush2.msra.mxu0 0.0
  %328 = vmatprep.subr.mxu0 0.0
  %329 = vmatpush2.msra.mxu0 0.0
  %330 = vmatprep.subr.mxu0 0.0
  %331 = vmatpush2.msra.mxu0 0.0
  %332 = vmatprep.subr.mxu0 0.0
  %333 = vmatpush2.msra.mxu0 0.0
  %334 = vmatprep.subr.mxu0 0.0
  %335 = vmatpush2.msra.mxu0 0.0
  %336 = vmatprep.subr.mxu0 0.0
  %337 = vmatpush2.msra.mxu0 0.0
  %338 = vmatprep.subr.mxu0 0.0
  %339 = vmatpush2.msra.mxu0 0.0
  %340 = vmatprep.subr.mxu0 0.0
  %341 = vmatpush2.msra.mxu0 0.0
  %342 = vmatprep.subr.mxu0 0.0
  %343 = vmatpush2.msra.mxu0 0.0
  %344 = vmatprep.subr.mxu0 0.0
  %345 = vmatpush2.msra.mxu0 0.0
  %346 = vmatprep.subr.mxu0 0.0
  %347 = vmatpush2.msra.mxu0 0.0
  %348 = vmatprep.subr.mxu0 0.0
  %349 = vmatpush2.msra.mxu0 0.0
  %350 = vmatprep.subr.mxu0 0.0
  %351 = vmatpush2.msra.mxu0 0.0
  %352 = vmatprep.subr.mxu0 0.0
  %353 = vmatpush2.msra.mxu0 0.0
  %354 = vmatprep.mubr.f32.mxu0 0.0
  %355 = vmatmul.mubr.f32.gmra.mxu0 %v218
  %v356 = vpop.f32.mrf.mxu0
  %v357 = vadd.f32 0.0, %v356
  %v358 = vpop.f32.mrf.mxu0
  %359 = vdwg.mxu0
  %v360 = vmul.f32 %v287, %v287
  %v361 = vsub.f32 %v357, %v360
  %v362 = vadd.f32 %v361, 1e-05
  %v363 = vrsqrt.pop %v362
  %v364 = vmul.f32 %v206, %v363
  %v365 = vmul.f32 %v287, %v364
  %v366 = vsub.f32 %v207, %v365
  %368 = vset.pattern.permute.xlu0 0
  %369 = vperm.xlu0 %368, %v364
  %v370 = vpop.permute.xlu0 %369
  %v372 = vmul.f32 %v202, %v370
  %v373 = vmul.f32 %v204, %v370
  %375 = vset.pattern.permute.xlu0 0
  %376 = vperm.xlu0 %375, %v366
  %v377 = vpop.permute.xlu0 %376
  %v379 = vadd.f32 %v372, %v377
  %v380 = vadd.f32 %v373, %v377
  %v381 = vmax.f32 %v379, 0.0
  %v382 = vmax.f32 %v380, 0.0
  %383 = vrot.lane.b32.xlu0 %v381, 17
  %v384 = vpop.permute.xlu0 %383
  %385 = vrot.lane.b32.xlu0 %v382, 17
  %v386 = vpop.permute.xlu0 %385
  %v387 = vsel %vm61, %v384, %v386
  %v388 = vsel %vm61, %v386, %v384
  %389 = vrot.lane.b32.xlu0 %v381, 16
  %v390 = vpop.permute.xlu0 %389
  %391 = vrot.lane.b32.xlu0 %v382, 16
  %v392 = vpop.permute.xlu0 %391
  %v393 = vsel %vm68, %v390, %v392
  %v394 = vsel %vm68, %v392, %v390
  %395 = vrot.lane.b32.xlu0 %v381, 15
  %v396 = vpop.permute.xlu0 %395
  %397 = vrot.lane.b32.xlu0 %v382, 15
  %v398 = vpop.permute.xlu0 %397
  %v399 = vsel %vm75, %v396, %v398
  %v400 = vsel %vm75, %v398, %v396
  %401 = vrot.lane.b32.xlu0 %v381, 1
  %v402 = vpop.permute.xlu0 %401
  %403 = vrot.lane.b32.xlu0 %v382, 1
  %v404 = vpop.permute.xlu0 %403
  %v405 = vsel %vm82, %v402, %v404
  %v406 = vsel %vm82, %v404, %v402
  %407 = vrot.lane.b32.xlu0 %v381, 127
  %v408 = vpop.permute.xlu0 %407
  %409 = vrot.lane.b32.xlu0 %v382, 127
  %v410 = vpop.permute.xlu0 %409
  %v411 = vsel %vm89, %v408, %v410
  %v412 = vsel %vm89, %v410, %v408
  %413 = vrot.lane.b32.xlu0 %v381, 113
  %v414 = vpop.permute.xlu0 %413
  %415 = vrot.lane.b32.xlu0 %v382, 113
  %v416 = vpop.permute.xlu0 %415
  %v417 = vsel %vm96, %v414, %v416
  %v418 = vsel %vm96, %v416, %v414
  %419 = vrot.lane.b32.xlu0 %v381, 112
  %v420 = vpop.permute.xlu0 %419
  %421 = vrot.lane.b32.xlu0 %v382, 112
  %v422 = vpop.permute.xlu0 %421
  %v423 = vsel %vm103, %v420, %v422
  %v424 = vsel %vm103, %v422, %v420
  %425 = vrot.lane.b32.xlu0 %v381, 111
  %v426 = vpop.permute.xlu0 %425
  %427 = vrot.lane.b32.xlu0 %v382, 111
  %v428 = vpop.permute.xlu0 %427
  %v429 = vsel %vm110, %v426, %v428
  %v430 = vsel %vm110, %v428, %v426
  %v431 = vmul.f32 %v388, %v34
  %v432 = vmul.f32 %v387, %v35
  %v433 = vmul.f32 %v394, %v36
  %v434 = vmul.f32 %v393, %v37
  %v435 = vmul.f32 %v400, %v38
  %v436 = vmul.f32 %v399, %v39
  %v437 = vmul.f32 %v406, %v40
  %v438 = vmul.f32 %v405, %v41
  %v439 = vmul.f32 %v381, %v42
  %v440 = vmul.f32 %v382, %v43
  %v441 = vmul.f32 %v411, %v44
  %v442 = vmul.f32 %v412, %v45
  %v443 = vmul.f32 %v417, %v46
  %v444 = vmul.f32 %v418, %v47
  %v445 = vmul.f32 %v423, %v48
  %v446 = vmul.f32 %v424, %v49
  %v447 = vmul.f32 %v429, %v50
  %v448 = vmul.f32 %v430, %v51
  %v450 = vsel %vm131, %v54, 0
  %452 = vmatprep.subr.mxu0 0.0
  %453 = vmatpush1.msra.mxu0 0.0
  %454 = vmatprep.subr.mxu0 0.0
  %455 = vmatpush1.msra.mxu0 0.0
  %456 = vmatprep.subr.mxu0 0.0
  %457 = vmatpush1.msra.mxu0 0.0
  %458 = vmatprep.subr.mxu0 0.0
  %459 = vmatpush1.msra.mxu0 0.0
  %460 = vmatprep.subr.mxu0 0.0
  %461 = vmatpush1.msra.mxu0 0.0
  %462 = vmatprep.subr.mxu0 0.0
  %463 = vmatpush1.msra.mxu0 0.0
  %464 = vmatprep.subr.mxu0 0.0
  %465 = vmatpush1.msra.mxu0 0.0
  %466 = vmatprep.subr.mxu0 %v448
  %467 = vmatpush1.msra.mxu0 %v447
  %468 = vmatprep.subr.mxu0 %v446
  %469 = vmatpush1.msra.mxu0 %v445
  %470 = vmatprep.subr.mxu0 %v444
  %471 = vmatpush1.msra.mxu0 %v443
  %472 = vmatprep.subr.mxu0 %v442
  %473 = vmatpush1.msra.mxu0 %v441
  %474 = vmatprep.subr.mxu0 %v440
  %475 = vmatpush1.msra.mxu0 %v439
  %476 = vmatprep.subr.mxu0 %v438
  %477 = vmatpush1.msra.mxu0 %v437
  %478 = vmatprep.subr.mxu0 %v436
  %479 = vmatpush1.msra.mxu0 %v435
  %480 = vmatprep.subr.mxu0 %v434
  %481 = vmatpush1.msra.mxu0 %v433
  %482 = vmatprep.subr.mxu0 %v432
  %483 = vmatpush1.msra.mxu0 %v431
  %484 = vmatprep.subr.mxu0 0.0
  %485 = vmatpush2.msra.mxu0 0.0
  %486 = vmatprep.subr.mxu0 0.0
  %487 = vmatpush2.msra.mxu0 0.0
  %488 = vmatprep.subr.mxu0 0.0
  %489 = vmatpush2.msra.mxu0 0.0
  %490 = vmatprep.subr.mxu0 0.0
  %491 = vmatpush2.msra.mxu0 0.0
  %492 = vmatprep.subr.mxu0 0.0
  %493 = vmatpush2.msra.mxu0 0.0
  %494 = vmatprep.subr.mxu0 0.0
  %495 = vmatpush2.msra.mxu0 0.0
  %496 = vmatprep.subr.mxu0 0.0
  %497 = vmatpush2.msra.mxu0 0.0
  %498 = vmatprep.subr.mxu0 0.0
  %499 = vmatpush2.msra.mxu0 0.0
  %500 = vmatprep.subr.mxu0 0.0
  %501 = vmatpush2.msra.mxu0 0.0
  %502 = vmatprep.subr.mxu0 0.0
  %503 = vmatpush2.msra.mxu0 0.0
  %504 = vmatprep.subr.mxu0 0.0
  %505 = vmatpush2.msra.mxu0 0.0
  %506 = vmatprep.subr.mxu0 0.0
  %507 = vmatpush2.msra.mxu0 0.0
  %508 = vmatprep.subr.mxu0 0.0
  %509 = vmatpush2.msra.mxu0 0.0
  %510 = vmatprep.subr.mxu0 0.0
  %511 = vmatpush2.msra.mxu0 0.0
  %512 = vmatprep.subr.mxu0 0.0
  %513 = vmatpush2.msra.mxu0 0.0
  %514 = vmatprep.subr.mxu0 0.0
  %515 = vmatpush2.msra.mxu0 0.0
  %516 = vmatprep.mubr.f32.mxu0 0.0
  %517 = vmatmul.mubr.f32.gmra.mxu0 %v450
  %v518 = vpop.f32.mrf.mxu0
  %v519 = vadd.f32 0.0, %v518
  %v520 = vpop.f32.mrf.mxu0
  %v521 = vadd.f32 0.0, %v520
  %522 = vdwg.mxu0
  %v523 = vld [vmem:[%s5] sm:$0xff]
  %v524 = vld [vmem:[%s6] sm:$0xff]
  %v525 = vadd.f32 %v519, %v521
  %526 = vadd.xlane.f32.xlu0 %v525
  %v527 = vpop.xlane.xlu0 %526
  %v528 = vmul.f32 %v519, %v519
  %v529 = vmul.f32 %v521, %v521
  %v530 = vadd.f32 %v528, %v529
  %531 = vadd.xlane.f32.xlu0 %v530
  %v532 = vpop.xlane.xlu0 %531
  %533 = vmatprep.subr.mxu0 0.0
  %534 = vmatpush1.msra.mxu0 0.0
  %535 = vmatprep.subr.mxu0 0.0
  %536 = vmatpush1.msra.mxu0 0.0
  %537 = vmatprep.subr.mxu0 0.0
  %538 = vmatpush1.msra.mxu0 0.0
  %539 = vmatprep.subr.mxu0 0.0
  %540 = vmatpush1.msra.mxu0 0.0
  %541 = vmatprep.subr.mxu0 0.0
  %542 = vmatpush1.msra.mxu0 0.0
  %543 = vmatprep.subr.mxu0 0.0
  %544 = vmatpush1.msra.mxu0 0.0
  %545 = vmatprep.subr.mxu0 0.0
  %546 = vmatpush1.msra.mxu0 0.0
  %547 = vmatprep.subr.mxu0 0.0
  %548 = vmatpush1.msra.mxu0 0.0
  %549 = vmatprep.subr.mxu0 0.0
  %550 = vmatpush1.msra.mxu0 0.0
  %551 = vmatprep.subr.mxu0 0.0
  %552 = vmatpush1.msra.mxu0 0.0
  %553 = vmatprep.subr.mxu0 0.0
  %554 = vmatpush1.msra.mxu0 0.0
  %555 = vmatprep.subr.mxu0 0.0
  %556 = vmatpush1.msra.mxu0 0.0
  %557 = vmatprep.subr.mxu0 0.0
  %558 = vmatpush1.msra.mxu0 0.0
  %559 = vmatprep.subr.mxu0 0.0
  %560 = vmatpush1.msra.mxu0 0.0
  %561 = vmatprep.subr.mxu0 0.0
  %562 = vmatpush1.msra.mxu0 0.0
  %563 = vmatprep.subr.mxu0 0.0
  %564 = vmatpush1.msra.mxu0 %v527
  %565 = vmatprep.subr.mxu0 0.0
  %566 = vmatpush2.msra.mxu0 0.0
  %567 = vmatprep.subr.mxu0 0.0
  %568 = vmatpush2.msra.mxu0 0.0
  %569 = vmatprep.subr.mxu0 0.0
  %570 = vmatpush2.msra.mxu0 0.0
  %571 = vmatprep.subr.mxu0 0.0
  %572 = vmatpush2.msra.mxu0 0.0
  %573 = vmatprep.subr.mxu0 0.0
  %574 = vmatpush2.msra.mxu0 0.0
  %575 = vmatprep.subr.mxu0 0.0
  %576 = vmatpush2.msra.mxu0 0.0
  %577 = vmatprep.subr.mxu0 0.0
  %578 = vmatpush2.msra.mxu0 0.0
  %579 = vmatprep.subr.mxu0 0.0
  %580 = vmatpush2.msra.mxu0 0.0
  %581 = vmatprep.subr.mxu0 0.0
  %582 = vmatpush2.msra.mxu0 0.0
  %583 = vmatprep.subr.mxu0 0.0
  %584 = vmatpush2.msra.mxu0 0.0
  %585 = vmatprep.subr.mxu0 0.0
  %586 = vmatpush2.msra.mxu0 0.0
  %587 = vmatprep.subr.mxu0 0.0
  %588 = vmatpush2.msra.mxu0 0.0
  %589 = vmatprep.subr.mxu0 0.0
  %590 = vmatpush2.msra.mxu0 0.0
  %591 = vmatprep.subr.mxu0 0.0
  %592 = vmatpush2.msra.mxu0 0.0
  %593 = vmatprep.subr.mxu0 0.0
  %594 = vmatpush2.msra.mxu0 0.0
  %595 = vmatprep.subr.mxu0 0.0
  %596 = vmatpush2.msra.mxu0 0.0
  %597 = vmatprep.mubr.f32.mxu0 0.0
  %598 = vmatmul.mubr.f32.gmra.mxu0 %v218
  %v599 = vpop.f32.mrf.mxu0
  %v600 = vadd.f32 0.0, %v599
  %v601 = vpop.f32.mrf.mxu0
  %602 = vdwg.mxu0
  %603 = vmatprep.subr.mxu0 0.0
  %604 = vmatpush1.msra.mxu0 0.0
  %605 = vmatprep.subr.mxu0 0.0
  %606 = vmatpush1.msra.mxu0 0.0
  %607 = vmatprep.subr.mxu0 0.0
  %608 = vmatpush1.msra.mxu0 0.0
  %609 = vmatprep.subr.mxu0 0.0
  %610 = vmatpush1.msra.mxu0 0.0
  %611 = vmatprep.subr.mxu0 0.0
  %612 = vmatpush1.msra.mxu0 0.0
  %613 = vmatprep.subr.mxu0 0.0
  %614 = vmatpush1.msra.mxu0 0.0
  %615 = vmatprep.subr.mxu0 0.0
  %616 = vmatpush1.msra.mxu0 0.0
  %617 = vmatprep.subr.mxu0 0.0
  %618 = vmatpush1.msra.mxu0 0.0
  %619 = vmatprep.subr.mxu0 0.0
  %620 = vmatpush1.msra.mxu0 0.0
  %621 = vmatprep.subr.mxu0 0.0
  %622 = vmatpush1.msra.mxu0 0.0
  %623 = vmatprep.subr.mxu0 0.0
  %624 = vmatpush1.msra.mxu0 0.0
  %625 = vmatprep.subr.mxu0 0.0
  %626 = vmatpush1.msra.mxu0 0.0
  %627 = vmatprep.subr.mxu0 0.0
  %628 = vmatpush1.msra.mxu0 0.0
  %629 = vmatprep.subr.mxu0 0.0
  %630 = vmatpush1.msra.mxu0 0.0
  %631 = vmatprep.subr.mxu0 0.0
  %632 = vmatpush1.msra.mxu0 0.0
  %633 = vmatprep.subr.mxu0 0.0
  %634 = vmatpush1.msra.mxu0 %v532
  %635 = vmatprep.subr.mxu0 0.0
  %636 = vmatpush2.msra.mxu0 0.0
  %637 = vmatprep.subr.mxu0 0.0
  %638 = vmatpush2.msra.mxu0 0.0
  %639 = vmatprep.subr.mxu0 0.0
  %640 = vmatpush2.msra.mxu0 0.0
  %641 = vmatprep.subr.mxu0 0.0
  %642 = vmatpush2.msra.mxu0 0.0
  %643 = vmatprep.subr.mxu0 0.0
  %644 = vmatpush2.msra.mxu0 0.0
  %645 = vmatprep.subr.mxu0 0.0
  %646 = vmatpush2.msra.mxu0 0.0
  %647 = vmatprep.subr.mxu0 0.0
  %648 = vmatpush2.msra.mxu0 0.0
  %649 = vmatprep.subr.mxu0 0.0
  %650 = vmatpush2.msra.mxu0 0.0
  %651 = vmatprep.subr.mxu0 0.0
  %652 = vmatpush2.msra.mxu0 0.0
  %653 = vmatprep.subr.mxu0 0.0
  %654 = vmatpush2.msra.mxu0 0.0
  %655 = vmatprep.subr.mxu0 0.0
  %656 = vmatpush2.msra.mxu0 0.0
  %657 = vmatprep.subr.mxu0 0.0
  %658 = vmatpush2.msra.mxu0 0.0
  %659 = vmatprep.subr.mxu0 0.0
  %660 = vmatpush2.msra.mxu0 0.0
  %661 = vmatprep.subr.mxu0 0.0
  %662 = vmatpush2.msra.mxu0 0.0
  %663 = vmatprep.subr.mxu0 0.0
  %664 = vmatpush2.msra.mxu0 0.0
  %665 = vmatprep.subr.mxu0 0.0
  %666 = vmatpush2.msra.mxu0 0.0
  %667 = vmatprep.mubr.f32.mxu0 0.0
  %668 = vmatmul.mubr.f32.gmra.mxu0 %v218
  %v669 = vpop.f32.mrf.mxu0
  %v670 = vadd.f32 0.0, %v669
  %v671 = vpop.f32.mrf.mxu0
  %672 = vdwg.mxu0
  %v673 = vmul.f32 %v600, %v600
  %v674 = vsub.f32 %v670, %v673
  %v675 = vadd.f32 %v674, 1e-05
  %v676 = vrsqrt.pop %v675
  %v677 = vmul.f32 %v523, %v676
  %v678 = vmul.f32 %v600, %v677
  %v679 = vsub.f32 %v524, %v678
  %681 = vset.pattern.permute.xlu0 0
  %682 = vperm.xlu0 %681, %v677
  %v683 = vpop.permute.xlu0 %682
  %v685 = vmul.f32 %v519, %v683
  %v686 = vmul.f32 %v521, %v683
  %688 = vset.pattern.permute.xlu0 0
  %689 = vperm.xlu0 %688, %v679
  %v690 = vpop.permute.xlu0 %689
  %v692 = vadd.f32 %v685, %v690
  %v693 = vadd.f32 %v686, %v690
  %v694 = vadd.f32 %v32, %v692
  %v695 = vadd.f32 %v33, %v693
  %v696 = vmax.f32 %v694, 0.0
  %v697 = vmax.f32 %v695, 0.0
  %698 = vst [vmem:[%s9] sm:$0xff] %v696
  %699 = vst [vmem:[%s9 + $0x8] sm:$0xff] %v697
  // Predicated region
  $region38: #{residual_block.1} parent=0 // pred_check
    _
  $region39: #{residual_block.1} parent=0 // pred_check_branch
    %701 = sbr.rel (0) target = $region41
  $region40: #{residual_block.1} parent=0 // pred_region
    _
  $region41: #{residual_block.1} parent=0 // pred_fallthru
    _
  // Predicated region
  $region42: #{residual_block.1} parent=0 // pred_check
    _
  $region43: #{residual_block.1} parent=0 // pred_check_branch
    %703 = sbr.rel (0) target = $region45
  $region44: #{residual_block.1} parent=0 // pred_region
    _
  $region45: #{residual_block.1} parent=0 // pred_fallthru
    _

</llo_original>
